<compile_context>
chip_gen: v6e
topology: v6e:2x2x1
jax: 0.10.0
libtpu: 0.0.40
codegen_flags: <defaults>
</compile_context>

<pallas_src>
import jax
import jax.numpy as jnp
from jax.experimental import pallas as pl
from jax.experimental.pallas import tpu as pltpu


def _orth_fusion_kernel(fl_ref, fg_col_ref, fgn_col_ref, out_ref):
    # fl_ref: (C, TS) native dtype; fg_col_ref: (C, 1) native dtype;
    # fgn_col_ref: (C, 1) f32 = fg / ||fg||; out_ref: (2, C, TS).
    fl = fl_ref[...]
    fg_col = fg_col_ref[...]
    fgn_col = fgn_col_ref[...]

    fl32 = fl.astype(jnp.float32)

    # dot_n[s] = <fg/||fg||, fl[:, s]> per spatial lane:
    # VPU multiply-add tree across vregs + final 8-sublane fold on the XLU.
    dot_n = jnp.sum(fl32 * fgn_col, axis=0, keepdims=True)        # (1, TS) f32

    # Rank-1 update kept in f32 (cancellation-prone subtraction), cast once.
    orth = fl32 - fg_col.astype(jnp.float32) * dot_n               # (C, TS) f32

    out_dtype = out_ref.dtype
    out_ref[0] = orth.astype(out_dtype)
    # Replicate half: fg broadcast over spatial, native dtype (no f32 round-trip).
    out_ref[1] = jnp.broadcast_to(fg_col, fl.shape).astype(out_dtype)


def orthogonal_fusion(fl, fg, *, vmem_block_budget_bytes=32 * 1024 * 1024):
    """fl: (bs, c, w, h), fg: (bs, c) -> (bs, 2c, w, h)."""
    bs, c, w, h = fl.shape
    s = w * h
    dtype = fl.dtype
    itemsize = jnp.dtype(dtype).itemsize

    # --- hoisted per-batch norm (f32, before any downcast of fg) -------------
    fg32 = fg.astype(jnp.float32)
    inv_norm = jax.lax.rsqrt(jnp.sum(fg32 * fg32, axis=1, keepdims=True))  # (bs,1)
    fgn_col = (fg32 * inv_norm).reshape(bs, c, 1)          # f32, fg / ||fg||
    fg_col = fg.astype(dtype).reshape(bs, c, 1)            # native dtype
    fl_flat = fl.reshape(bs, c, s)                          # no padding, no copy

    # --- device VMEM ceiling --------------------------------------------------
    try:
        vmem_cap = int(pltpu.get_tpu_info().vmem_capacity_bytes)
    except Exception:
        vmem_cap = 64 * 1024 * 1024          # conservative (v7x per-core VMEM)
    vmem_ceiling = int(0.85 * vmem_cap)
    budget = min(int(vmem_block_budget_bytes), int(0.75 * vmem_ceiling))

    # --- spatial tiling: lane-dense, near-divisor of S, enough grid steps -----
    n_units = pl.cdiv(s, 128)                               # 128-lane units in S
    # Double-buffered bytes per 128-lane unit: fl (c) + out (2c).
    per_unit_bytes = 2 * (3 * c) * itemsize * 128
    cap_units = max(1, min(32, budget // per_unit_bytes))   # ts <= 4096 lanes
    n_tiles = pl.cdiv(n_units, cap_units)
    # Keep the pipeline / both TensorCores fed: aim for >= 4 grid steps.
    min_steps = 4
    if bs * n_tiles < min_steps:
        n_tiles = min(n_units, pl.cdiv(min_steps, bs))
    units_per_tile = pl.cdiv(n_units, n_tiles)
    ts = units_per_tile * 128
    n_s_tiles = pl.cdiv(n_units, units_per_tile)
    if n_s_tiles == 1:
        # Single tile: make the block exactly the full spatial extent (always a
        # legal block shape, avoids any over-sized edge block).
        ts = s
    # When ts does not divide S, Pallas clips the edge block (masked stores);
    # no wrapper-side padded copy or output slice is needed.

    # --- explicit VMEM limit, clamped to the device ---------------------------
    block_bytes = (3 * c * ts) * itemsize + c * 128 * (itemsize + 4)
    needed = 2 * block_bytes + (2 << 20)
    vmem_limit = int(min(vmem_ceiling, max(32 * 1024 * 1024, needed)))

    out = pl.pallas_call(
        _orth_fusion_kernel,
        out_shape=jax.ShapeDtypeStruct((bs, 2, c, s), dtype),
        grid_spec=pltpu.PrefetchScalarGridSpec(
            num_scalar_prefetch=0,
            grid=(bs, n_s_tiles),
            in_specs=[
                # None squeezes the per-batch leading dim out of the kernel refs.
                pl.BlockSpec((None, c, ts), lambda b, si: (b, 0, si)),
                pl.BlockSpec((None, c, 1), lambda b, si: (b, 0, 0)),
                pl.BlockSpec((None, c, 1), lambda b, si: (b, 0, 0)),
            ],
            out_specs=pl.BlockSpec((None, 2, c, ts), lambda b, si: (b, 0, 0, si)),
        ),
        compiler_params=pltpu.CompilerParams(
            dimension_semantics=("parallel", "parallel"),
            vmem_limit_bytes=vmem_limit,
        ),
    )(fl_flat, fg_col, fgn_col)

    # (bs, 2, c, s) -> (bs, 2c, w, h): contiguous reshape, no data movement.
    return out.reshape(bs, 2 * c, w, h)


def _reference(fl, fg):
    bs, c, w, h = fl.shape
    fl_flat = fl.reshape(bs, c, -1)
    dot = jnp.einsum("bc,bcs->bs", fg, fl_flat).reshape(bs, 1, w, h)
    fg_norm = jnp.linalg.norm(fg, axis=1)
    proj = dot / fg_norm[:, None, None, None] * fg[:, :, None, None]
    orth = fl - proj
    rep = jnp.broadcast_to(fg[:, :, None, None], (bs, c, w, h))
    return jnp.concatenate([orth, rep], axis=1)


if __name__ == "__main__":
    key = jax.random.PRNGKey(0)
    k1, k2, k3, k4 = jax.random.split(key, 4)

    # Primary check: bs=2, c=4, 16x16 spatial (S=256, lane-dense, 2 exact tiles).
    bs, c, w, h = 2, 4, 16, 16
    fl = jax.random.normal(k1, (bs, c, w, h), dtype=jnp.float32)
    fg = jax.random.normal(k2, (bs, c), dtype=jnp.float32)
    out = orthogonal_fusion(fl, fg)
    jax.block_until_ready(out)
    ref = _reference(fl, fg)
    assert out.shape == (bs, 2 * c, w, h)
    assert jnp.allclose(out, ref, atol=1e-5, rtol=1e-5)

    # Secondary check: 7x7 spatial (S=49) exercises the ragged (masked-store) path.
    fl2 = jax.random.normal(k3, (1, 8, 7, 7), dtype=jnp.float32)
    fg2 = jax.random.normal(k4, (1, 8), dtype=jnp.float32)
    out2 = orthogonal_fusion(fl2, fg2)
    jax.block_until_ready(out2)
    assert jnp.allclose(out2, _reference(fl2, fg2), atol=1e-5, rtol=1e-5)

    print("KERNEL_OK")
</pallas_src>

<mosaic_0001>
module attributes {stable_mosaic.version = 11 : i64} {
  func.func @_orth_fusion_kernel(%arg0: i32, %arg1: i32, %arg2: memref<1x4x128xf32, #tpu.memory_space<vmem>>, %arg3: memref<1x4x1xf32, #tpu.memory_space<vmem>>, %arg4: memref<1x4x1xf32, #tpu.memory_space<vmem>>, %arg5: memref<1x2x4x128xf32, #tpu.memory_space<vmem>>) attributes {dimension_semantics = [#tpu.dimension_semantics<parallel>, #tpu.dimension_semantics<parallel>], iteration_bounds = array<i64: 2, 2>, scalar_prefetch = 0 : i64, scratch_operands = 0 : i64, tpu.core_type = #tpu.core_type<tc>, window_params = [{transform_indices = @transform_0, window_bounds = array<i64: 1, 4, 128>}, {transform_indices = @transform_1, window_bounds = array<i64: 1, 4, 1>}, {transform_indices = @transform_2, window_bounds = array<i64: 1, 4, 1>}, {transform_indices = @transform_3, window_bounds = array<i64: 1, 2, 4, 128>}]} {
    %c0 = arith.constant 0 : index
    %c0_0 = arith.constant 0 : index
    %c0_1 = arith.constant 0 : index
    %0 = vector.load %arg2[%c0, %c0_0, %c0_1] : memref<1x4x128xf32, #tpu.memory_space<vmem>>, vector<1x4x128xf32>
    %1 = vector.shape_cast %0 : vector<1x4x128xf32> to vector<4x128xf32>
    %c0_2 = arith.constant 0 : index
    %c0_3 = arith.constant 0 : index
    %c0_4 = arith.constant 0 : index
    %2 = vector.load %arg3[%c0_2, %c0_3, %c0_4] : memref<1x4x1xf32, #tpu.memory_space<vmem>>, vector<1x4x1xf32>
    %3 = vector.shape_cast %2 : vector<1x4x1xf32> to vector<4x1xf32>
    %c0_5 = arith.constant 0 : index
    %c0_6 = arith.constant 0 : index
    %c0_7 = arith.constant 0 : index
    %4 = vector.load %arg4[%c0_5, %c0_6, %c0_7] : memref<1x4x1xf32, #tpu.memory_space<vmem>>, vector<1x4x1xf32>
    %5 = vector.shape_cast %4 : vector<1x4x1xf32> to vector<4x1xf32>
    %6 = vector.broadcast %5 : vector<4x1xf32> to vector<4x128xf32>
    %7 = arith.mulf %1, %6 : vector<4x128xf32>
    %cst = arith.constant dense<0.000000e+00> : vector<128xf32>
    %8 = vector.multi_reduction <add>, %7, %cst [0] : vector<4x128xf32> to vector<128xf32>
    %9 = vector.shape_cast %8 : vector<128xf32> to vector<1x128xf32>
    %10 = vector.broadcast %3 : vector<4x1xf32> to vector<4x128xf32>
    %11 = vector.broadcast %9 : vector<1x128xf32> to vector<4x128xf32>
    %12 = arith.mulf %10, %11 : vector<4x128xf32>
    %13 = arith.subf %1, %12 : vector<4x128xf32>
    %c0_8 = arith.constant 0 : index
    %c0_9 = arith.constant 0 : index
    %c0_10 = arith.constant 0 : index
    %c0_11 = arith.constant 0 : index
    %14 = vector.load %arg5[%c0_8, %c0_9, %c0_10, %c0_11] : memref<1x2x4x128xf32, #tpu.memory_space<vmem>>, vector<1x1x4x128xf32>
    %15 = vector.shape_cast %14 : vector<1x1x4x128xf32> to vector<4x128xf32>
    %16 = vector.shape_cast %13 : vector<4x128xf32> to vector<1x1x4x128xf32>
    tpu.vector_store %arg5[%c0_8, %c0_9, %c0_10, %c0_11], %16 {strides = array<i32>} : memref<1x2x4x128xf32, #tpu.memory_space<vmem>>, vector<1x1x4x128xf32>,
    %17 = vector.shape_cast %3 : vector<4x1xf32> to vector<4x1xf32>
    %18 = vector.broadcast %17 : vector<4x1xf32> to vector<4x128xf32>
    %c0_12 = arith.constant 0 : index
    %c1 = arith.constant 1 : index
    %c0_13 = arith.constant 0 : index
    %c0_14 = arith.constant 0 : index
    %19 = vector.load %arg5[%c0_12, %c1, %c0_13, %c0_14] : memref<1x2x4x128xf32, #tpu.memory_space<vmem>>, vector<1x1x4x128xf32>
    %20 = vector.shape_cast %19 : vector<1x1x4x128xf32> to vector<4x128xf32>
    %21 = vector.shape_cast %18 : vector<4x128xf32> to vector<1x1x4x128xf32>
    tpu.vector_store %arg5[%c0_12, %c1, %c0_13, %c0_14], %21 {strides = array<i32>} : memref<1x2x4x128xf32, #tpu.memory_space<vmem>>, vector<1x1x4x128xf32>,
    return
  }
  func.func @transform_0(%arg0: i32, %arg1: i32) -> (i32, i32, i32) {
    %c0_i32 = arith.constant 0 : i32
    %c0_i32_0 = arith.constant 0 : i32
    return %arg0, %c0_i32, %arg1 : i32, i32, i32
  }
  func.func @transform_1(%arg0: i32, %arg1: i32) -> (i32, i32, i32) {
    %c0_i32 = arith.constant 0 : i32
    %c0_i32_0 = arith.constant 0 : i32
    %c0_i32_1 = arith.constant 0 : i32
    return %arg0, %c0_i32, %c0_i32_0 : i32, i32, i32
  }
  func.func @transform_2(%arg0: i32, %arg1: i32) -> (i32, i32, i32) {
    %c0_i32 = arith.constant 0 : i32
    %c0_i32_0 = arith.constant 0 : i32
    %c0_i32_1 = arith.constant 0 : i32
    return %arg0, %c0_i32, %c0_i32_0 : i32, i32, i32
  }
  func.func @transform_3(%arg0: i32, %arg1: i32) -> (i32, i32, i32, i32) {
    %c0_i32 = arith.constant 0 : i32
    %c0_i32_0 = arith.constant 0 : i32
    %c0_i32_1 = arith.constant 0 : i32
    return %arg0, %c0_i32, %c0_i32_0, %arg1 : i32, i32, i32, i32
  }
}

</mosaic_0001>

<llo_original>
// kernel: tpu_custom_call.1
$region0: #{tpu_custom_call.1}
  #allocation0 [shape = 'u32[]', space=smem, size = 0x4, offset = 0x4, fixed_abs, tag = 'smem constant byte address 0x4 - core index']
  #allocation1 [shape = 'u32[144,128]{1,0:T(1,128)}', space=vmem, size = 0x12000, scoped, tag = 'internal scratch']
  %s0 = inlined_call_operand.vmem [shape: f32[2,4,256], index: 0, kind: input, shape index: {}]
  %s1 = inlined_call_operand.vmem [shape: f32[2,4,1], index: 1, kind: input, shape index: {}]
  %s2 = inlined_call_operand.vmem [shape: f32[2,4,1], index: 2, kind: input, shape index: {}]
  %s3 = inlined_call_operand.hbm [shape: f32[2,2,4,256], index: 3, kind: output, shape index: {}]
  %s4 = sld [smem:[#allocation0]]
  $region45: #{tpu_custom_call.1} parent=0
    _
  %s6 = ssub.s32 1, %s4
  %s7 = scalar_select 0, %s6, %s4
  $region1: #{tpu_custom_call.1} parent=0
    #allocation2 [shape = 'u8[8192]{0}', space=vmem, size = 0x2000, scoped, tag = 'output window, operand 0']
    #allocation3 [shape = 's32[2]{0}', space=sflag, size = 0x8, scoped, tag = 'scoped memory for tpu_custom_call.1']
    %8 = vsyncpa [#allocation3], 0
    %s9 = scalar_lea.sflag [#allocation3], 1
    %10 = vsyncpa %s9, 0
    loop: start=0, step=1, limit=6
    $region2: #{tpu_custom_call.1} parent=1 // loop_pre_header
      _
    $region3: #{tpu_custom_call.1} parent=1 // loop_header
      %s12 = sphi 0, %s16
      %p13 = scmp.ge.s32.totalorder %s12, 6
      %s19 = sphi 0, %s31
      %s20 = sphi 0, %s27
      %s21 = sphi 0, %s19
      %s22 = sphi 0, %s20
      %s23 = sphi 0, %s21
      %s24 = sphi 0, %s22
      %s36 = sphi 0, %s38
      %s39 = sphi 0, %s36
      %s40 = sphi 0, %s39
      %s56 = sphi 0, %s40
      %s62 = sphi 0, %s64
      %s65 = sphi 0, %s62
      %s66 = sphi 0, %s65
      %s82 = sphi 0, %s66
      %s88 = sphi 0, %s90
      %s91 = sphi 0, %s88
      %s92 = sphi 0, %s91
      %s108 = sphi 0, %s92
      %s116 = sphi 0, %s118
      %s119 = sphi 0, %s116
      %s120 = sphi 0, %s119
      %s136 = sphi 0, %s120
    $region4: #{tpu_custom_call.1} parent=1 // loop_header_branch
      %15 = sbr.rel (%p13) target = $region8
    $region5: #{tpu_custom_call.1} parent=1 // loop_body
      %s17 = ssub.s32 %s12, 1
      %s18 = ssub.s32 %s12, 2
      %s25 = sadd.s32 1, %s20
      %p26 = scmp.ge.s32.totalorder %s25, 2
      %s27 = scalar_select %p26, 0, %s25
      %s28 = sadd.s32 1, %s19
      %s29 = scalar_select %p26, %s28, %s19
      %p30 = scmp.ge.s32.totalorder %s29, 2
      %s31 = scalar_select %p30, 0, %s29
      %s32 = ssub.s32 %s19, %s31
      %s33 = ssub.s32 %s20, %s27
      %s34 = sor.u32 %s32, %s33
      %p35 = scmp.eq.s32.totalorder %s34, 0
      %s37 = sadd.s32 %s36, 1
      %s38 = scalar_select %p35, %s36, %s37
      %p41 = pneg %p35
      %p42 = scmp.eq.s32.totalorder %s12, 3
      %p43 = por %p41, %p42
      %p44 = scmp.ne.s32.totalorder %s36, %s39
      %p45 = scmp.eq.s32.totalorder %s12, 0
      %p46 = por %p44, %p45
      %p47 = scmp.ne.s32.totalorder %s36, %s39
      %p48 = scmp.eq.s32.totalorder %s17, 3
      %p49 = por %p47, %p48
      %p50 = scmp.ne.s32.totalorder %s39, %s40
      %p51 = scmp.eq.s32.totalorder %s17, 0
      %p52 = por %p50, %p51
      %p53 = scmp.ne.s32.totalorder %s39, %s40
      %p54 = scmp.eq.s32.totalorder %s18, 3
      %p55 = por %p53, %p54
      %p57 = scmp.ne.s32.totalorder %s40, %s56
      %p58 = scmp.eq.s32.totalorder %s18, 0
      %p59 = por %p57, %p58
      %s60 = ssub.s32 %s19, %s31
      %p61 = scmp.eq.s32.totalorder %s60, 0
      %s63 = sadd.s32 %s62, 1
      %s64 = scalar_select %p61, %s62, %s63
      %p67 = pneg %p61
      %p68 = scmp.eq.s32.totalorder %s12, 3
      %p69 = por %p67, %p68
      %p70 = scmp.ne.s32.totalorder %s62, %s65
      %p71 = scmp.eq.s32.totalorder %s12, 0
      %p72 = por %p70, %p71
      %p73 = scmp.ne.s32.totalorder %s62, %s65
      %p74 = scmp.eq.s32.totalorder %s17, 3
      %p75 = por %p73, %p74
      %p76 = scmp.ne.s32.totalorder %s65, %s66
      %p77 = scmp.eq.s32.totalorder %s17, 0
      %p78 = por %p76, %p77
      %p79 = scmp.ne.s32.totalorder %s65, %s66
      %p80 = scmp.eq.s32.totalorder %s18, 3
      %p81 = por %p79, %p80
      %p83 = scmp.ne.s32.totalorder %s66, %s82
      %p84 = scmp.eq.s32.totalorder %s18, 0
      %p85 = por %p83, %p84
      %s86 = ssub.s32 %s19, %s31
      %p87 = scmp.eq.s32.totalorder %s86, 0
      %s89 = sadd.s32 %s88, 1
      %s90 = scalar_select %p87, %s88, %s89
      %p93 = pneg %p87
      %p94 = scmp.eq.s32.totalorder %s12, 3
      %p95 = por %p93, %p94
      %p96 = scmp.ne.s32.totalorder %s88, %s91
      %p97 = scmp.eq.s32.totalorder %s12, 0
      %p98 = por %p96, %p97
      %p99 = scmp.ne.s32.totalorder %s88, %s91
      %p100 = scmp.eq.s32.totalorder %s17, 3
      %p101 = por %p99, %p100
      %p102 = scmp.ne.s32.totalorder %s91, %s92
      %p103 = scmp.eq.s32.totalorder %s17, 0
      %p104 = por %p102, %p103
      %p105 = scmp.ne.s32.totalorder %s91, %s92
      %p106 = scmp.eq.s32.totalorder %s18, 3
      %p107 = por %p105, %p106
      %p109 = scmp.ne.s32.totalorder %s92, %s108
      %p110 = scmp.eq.s32.totalorder %s18, 0
      %p111 = por %p109, %p110
      %s112 = ssub.s32 %s19, %s31
      %s113 = ssub.s32 %s20, %s27
      %s114 = sor.u32 %s112, %s113
      %p115 = scmp.eq.s32.totalorder %s114, 0
      %s117 = sadd.s32 %s116, 1
      %s118 = scalar_select %p115, %s116, %s117
      %p121 = pneg %p115
      %p122 = scmp.eq.s32.totalorder %s12, 3
      %p123 = por %p121, %p122
      %p124 = scmp.ne.s32.totalorder %s116, %s119
      %p125 = scmp.eq.s32.totalorder %s12, 0
      %p126 = por %p124, %p125
      %p127 = scmp.ne.s32.totalorder %s116, %s119
      %p128 = scmp.eq.s32.totalorder %s17, 3
      %p129 = por %p127, %p128
      %p130 = scmp.ne.s32.totalorder %s119, %s120
      %p131 = scmp.eq.s32.totalorder %s17, 0
      %p132 = por %p130, %p131
      %p133 = scmp.ne.s32.totalorder %s119, %s120
      %p134 = scmp.eq.s32.totalorder %s18, 3
      %p135 = por %p133, %p134
      %p137 = scmp.ne.s32.totalorder %s120, %s136
      %p138 = scmp.eq.s32.totalorder %s18, 0
      %p139 = por %p137, %p138
      %p140 = scmp.le.s32.totalorder 1, %s12
      %p141 = scmp.lt.s32.totalorder %s12, 5
      %p142 = pnand %p140, %p141
      %p143 = pneg %p142
      // Predicated region
      $region9: #{tpu_custom_call.1} parent=5 // pred_check
        _
      $region10: #{tpu_custom_call.1} parent=5 // pred_check_branch
        %145 = sbr.rel (%p142) target = $region12
      $region11: #{tpu_custom_call.1} parent=5 // pred_region
        %s146 = ssub.s32 %s12, 1
      $region12: #{tpu_custom_call.1} parent=5 // pred_fallthru
        _
      %p147 = scmp.lt.s32.totalorder %s12, 4
      // Predicated region
      $region13: #{tpu_custom_call.1} parent=5 // pred_check
        %p148 = pneg %p147
      $region14: #{tpu_custom_call.1} parent=5 // pred_check_branch
        %150 = sbr.rel (%p148) target = $region16
      $region15: #{tpu_custom_call.1} parent=5 // pred_region
        // Predicated region
        $region17: #{tpu_custom_call.1} parent=15 // pred_check
          %p151 = pneg %p46
        $region18: #{tpu_custom_call.1} parent=15 // pred_check_branch
          %153 = sbr.rel (%p151) target = $region20
        $region19: #{tpu_custom_call.1} parent=15 // pred_region
          %p154 = scmp.lt.s32.totalorder %s19, 1
          %s155 = scalar_select %p154, %s19, 1
          %p156 = scmp.lt.s32.totalorder %s20, 1
          %s157 = scalar_select %p156, %s20, 1
          %s158 = smul.addr %s155, 2
          %s159 = sadd.s32 %s157, %s158
          %s160 = smul.addr %s159, 4
          %s161 = scalar_lea.vmem %s0, %s160
        $region20: #{tpu_custom_call.1} parent=15 // pred_fallthru
          _
        // Predicated region
        $region21: #{tpu_custom_call.1} parent=15 // pred_check
          %p162 = pneg %p72
        $region22: #{tpu_custom_call.1} parent=15 // pred_check_branch
          %164 = sbr.rel (%p162) target = $region24
        $region23: #{tpu_custom_call.1} parent=15 // pred_region
          %p165 = scmp.lt.s32.totalorder %s19, 1
          %s166 = scalar_select %p165, %s19, 1
          %s167 = smul.addr %s166, 4
          %s168 = scalar_lea.vmem %s1, %s167
        $region24: #{tpu_custom_call.1} parent=15 // pred_fallthru
          _
        // Predicated region
        $region25: #{tpu_custom_call.1} parent=15 // pred_check
          %p169 = pneg %p98
        $region26: #{tpu_custom_call.1} parent=15 // pred_check_branch
          %171 = sbr.rel (%p169) target = $region28
        $region27: #{tpu_custom_call.1} parent=15 // pred_region
          %p172 = scmp.lt.s32.totalorder %s19, 1
          %s173 = scalar_select %p172, %s19, 1
          %s174 = smul.addr %s173, 4
          %s175 = scalar_lea.vmem %s2, %s174
        $region28: #{tpu_custom_call.1} parent=15 // pred_fallthru
          _
      $region16: #{tpu_custom_call.1} parent=5 // pred_fallthru
        _
      %p176 = scmp.le.s32.totalorder 1, %s12
      %p177 = scmp.lt.s32.totalorder %s12, 5
      %p178 = pnand %p176, %p177
      %p179 = pneg %p178
      // Predicated region
      $region29: #{tpu_custom_call.1} parent=5 // pred_check
        _
      $region30: #{tpu_custom_call.1} parent=5 // pred_check_branch
        %181 = sbr.rel (%p178) target = $region32
      $region31: #{tpu_custom_call.1} parent=5 // pred_region
        %s182 = ssub.s32 %s12, 1
        %p183 = scmp.lt.s32.totalorder %s21, 1
        %s184 = scalar_select %p183, %s21, 1
        %p185 = scmp.lt.s32.totalorder %s22, 1
        %s186 = scalar_select %p185, %s22, 1
        %s187 = smul.addr %s184, 2
        %s188 = sadd.s32 %s186, %s187
        %s189 = smul.addr %s188, 4
        %s190 = scalar_lea.vmem %s0, %s189
        %p191 = pneg %p52
        %p192 = pneg %p49
        %p193 = scmp.lt.s32.totalorder %s21, 1
        %s194 = scalar_select %p193, %s21, 1
        %s195 = smul.addr %s194, 4
        %s196 = scalar_lea.vmem %s1, %s195
        %p197 = pneg %p78
        %p198 = pneg %p75
        %p199 = scmp.lt.s32.totalorder %s21, 1
        %s200 = scalar_select %p199, %s21, 1
        %s201 = smul.addr %s200, 4
        %s202 = scalar_lea.vmem %s2, %s201
        %p203 = pneg %p104
        %p204 = pneg %p101
        %p205 = pneg %p132
        %p206 = pneg %p129
        %s207 = sand.u32 %s119, 1
        %s208 = scalar_lea.sflag [#allocation3], %s207
        %s209 = sand.u32 %s119, 1
        %s210 = smul.addr %s209, 8
        %s211 = scalar_lea.vmem [#allocation2], %s210
        %p212 = scmp.lt.s32.totalorder %s21, 1
        %s213 = scalar_select %p212, %s21, 1
        %p214 = scmp.lt.s32.totalorder %s22, 1
        %s215 = scalar_select %p214, %s22, 1
        %s216 = smul.addr %s213, 2
        %s217 = sadd.s32 %s215, %s216
        %s218 = smul.addr %s217, 4
        %s219 = scalar_lea.vmem %s0, %s218
        %p220 = scmp.lt.s32.totalorder %s21, 1
        %s221 = scalar_select %p220, %s21, 1
        %s222 = smul.addr %s221, 4
        %s223 = scalar_lea.vmem %s1, %s222
        %p224 = scmp.lt.s32.totalorder %s21, 1
        %s225 = scalar_select %p224, %s21, 1
        %s226 = smul.addr %s225, 4
        %s227 = scalar_lea.vmem %s2, %s226
        %v228 = vld [vmem:[%s219] sm:$0xf]
        %v229 = vld [vmem:[%s223] sm:$0xf]
        %v230 = vld [vmem:[%s227] sm:$0xf]
        %232 = vset.pattern.permute.xlu0 0
        %233 = vperm.xlu0 %232, %v230
        %v234 = vpop.permute.xlu0 %233
        %v236 = vmul.f32 %v228, %v234
        %vm237 = vcmask 1043456
        %v238 = vsel %vm237, %v236, 0.0
        %v239 = vrot.slane %v238, 4
        %v240 = vadd.f32 %v238, %v239
        %v241 = vrot.slane %v240, 2
        %v242 = vadd.f32 %v240, %v241
        %v243 = vrot.slane %v242, 1
        %v244 = vadd.f32 %v242, %v243
        %246 = vset.pattern.permute.xlu0 0
        %247 = vperm.xlu0 %246, %v229
        %v248 = vpop.permute.xlu0 %247
        %v250 = vmul.f32 %v248, %v244
        %v251 = vsub.f32 %v228, %v250
        %252 = vst [vmem:[%s211] sm:$0xf] %v251
        %s253 = scalar_lea.vmem %s211, 4 [#allocation2]
        %254 = vst [vmem:[%s253] sm:$0xf] %v248
        %s255 = sand.u32 %s119, 1
        %s256 = scalar_lea.sflag [#allocation3], %s255
        %s257 = sand.u32 %s119, 1
        %s258 = smul.addr %s257, 8
        %s259 = scalar_lea.vmem [#allocation2], %s258
        // Predicated region
        $region33: #{tpu_custom_call.1} parent=31 // pred_check
          %p260 = pneg %p129
        $region34: #{tpu_custom_call.1} parent=31 // pred_check_branch
          %262 = sbr.rel (%p260) target = $region36
        $region35: #{tpu_custom_call.1} parent=31 // pred_region
          %s264 = ssub.s32 128, 128
          %265 = vsyncadd %s256, %s264
          %s266 = smul.addr %s21, 4
          %s267 = sadd.s32 %s22, %s266
          %s268 = smul.addr %s267, 64
          %s269 = scalar_lea.hbm %s3, %s268
          %s270 = sshll.u32 %s259, 4
          %s271 = int_to_ptr.vmem [resolvable:$true] %s270
          %276 = dma.vmem_to_hbm [thread:$0]  %s271, 128, %s269, %s256, 64, 128, 4
        $region36: #{tpu_custom_call.1} parent=31 // pred_fallthru
          _
      $region32: #{tpu_custom_call.1} parent=5 // pred_fallthru
        _
      %p277 = scmp.le.s32.totalorder 2, %s12
      // Predicated region
      $region37: #{tpu_custom_call.1} parent=5 // pred_check
        %p278 = pneg %p277
      $region38: #{tpu_custom_call.1} parent=5 // pred_check_branch
        %280 = sbr.rel (%p278) target = $region40
      $region39: #{tpu_custom_call.1} parent=5 // pred_region
        %s281 = ssub.s32 %s12, 2
        // Predicated region
        $region41: #{tpu_custom_call.1} parent=39 // pred_check
          %p282 = pneg %p135
        $region42: #{tpu_custom_call.1} parent=39 // pred_check_branch
          %284 = sbr.rel (%p282) target = $region44
        $region43: #{tpu_custom_call.1} parent=39 // pred_region
          %s285 = sand.u32 %s120, 1
          %s286 = scalar_lea.sflag [#allocation3], %s285
          %s287 = sand.u32 %s120, 1
          %s288 = smul.addr %s287, 8
          %s289 = scalar_lea.vmem [#allocation2], %s288
          %290 = dma.done %s286, 128
        $region44: #{tpu_custom_call.1} parent=39 // pred_fallthru
          _
      $region40: #{tpu_custom_call.1} parent=5 // pred_fallthru
        _
    $region6: #{tpu_custom_call.1} parent=1 // loop_footer
      %s16 = sadd.s32 1, %s12
    $region7: #{tpu_custom_call.1} parent=1 // loop_footer_branch
      %11 = sbr.rel target = $region3
    $region8: #{tpu_custom_call.1} parent=1 // loop_exit
      _
    %291 = vsyncpa [#allocation3], 1
    %s292 = scalar_lea.sflag [#allocation3], 1
    %293 = vsyncpa %s292, 1

</llo_original>
